<compile_context>
chip_gen: v5e
topology: v5e:2x2
jax: 0.10.0
libtpu: 0.0.40
codegen_flags: <defaults>
</compile_context>

<pallas_src>
import jax
import jax.numpy as jnp
from jax.experimental import pallas as pl
from jax.experimental.pallas import tpu as pltpu

_LANE = 128                         # pad out_dim to a multiple of this (unmasked vst)
_TM_MAX = 2048                      # hard cap on rows per M-tile
_TILE_VMEM_BUDGET = 20 * 1024 * 1024  # bytes of VMEM we allow the pipelined tiles to use


def _round_up(x, m):
    return ((x + m - 1) // m) * m


# ---------------------------------------------------------------------------
# Linear kernel
# ---------------------------------------------------------------------------
def _linear_kernel(x_ref, w_ref, b_ref, o_ref):
    # x_ref: (TM, K) bf16, w_ref: (K, N) bf16, b_ref: (1, N) f32, o_ref: (TM, N) f32
    acc = jnp.dot(x_ref[...], w_ref[...], preferred_element_type=jnp.float32)
    # Bias add is fused here; any further elementwise epilogue should also live
    # here (rides in free VALU slots while the kernel is DMA-bound).
    o_ref[...] = (acc + b_ref[...]).astype(o_ref.dtype)


def _choose_tm(M, K, N):
    """Pick an M-tile: as fat as the VMEM budget allows, but >=2 grid steps when
    possible so the 'parallel' M axis can shard across both v7x TensorCores."""
    per_row = 2 * K * 2 + 2 * N * 4            # double-buffered bf16 X + f32 out rows
    fixed = K * N * 2 + N * 4                  # single-buffered bf16 W^T + f32 bias
    budget = _TILE_VMEM_BUDGET - fixed
    tm_cap = max(8, min(_TM_MAX, (budget // per_row) // 8 * 8))
    if M <= tm_cap:
        half = _round_up(-(-M // 2), 8)        # ceil(M/2) rounded up to sublane multiple
        if M > 8 and half < M:
            return half                        # 2 grid steps -> both v7x cores used
        return M
    return tm_cap


def prepare_params(weight, bias):
    """One-time param prep (PyTorch nn.Linear convention in, kernel layout out).

    weight: (out_dim, in_dim) -> w_t: (in_dim, N) bf16, transposed, lane-padded only
                                 when out_dim is not a multiple of 128.
    bias:   (out_dim,)        -> b_row: (1, N) f32.
    """
    out_dim, in_dim = weight.shape
    n_pad = out_dim if out_dim % _LANE == 0 else _round_up(out_dim, _LANE)
    w_t = jnp.zeros((in_dim, n_pad), jnp.bfloat16).at[:, :out_dim].set(
        weight.T.astype(jnp.bfloat16))
    b_row = jnp.zeros((1, n_pad), jnp.float32).at[:, :out_dim].set(
        bias.astype(jnp.float32))
    return w_t, b_row, out_dim


def linear_pallas(x_flat, w_t, b_row):
    """x_flat: (M, K) f32, w_t: (K, N) bf16, b_row: (1, N) f32 -> (M, N) f32."""
    M, K = x_flat.shape
    N = w_t.shape[1]
    x_bf = x_flat.astype(jnp.bfloat16)

    TM = _choose_tm(M, K, N)
    grid = (pl.cdiv(M, TM),)

    kwargs = {}
    if jax.default_backend() == "tpu":
        # Real footprint + headroom, capped well below v7x's 64 MiB physical VMEM.
        footprint = 2 * TM * K * 2 + 2 * TM * N * 4 + K * N * 2 + N * 4
        vmem_limit = int(min(48 * 1024 * 1024,
                             max(16 * 1024 * 1024, footprint + 8 * 1024 * 1024)))
        kwargs["compiler_params"] = pltpu.CompilerParams(
            dimension_semantics=("parallel",),
            vmem_limit_bytes=vmem_limit,
        )

    cost = pl.CostEstimate(
        flops=2 * M * K * N,
        bytes_accessed=M * K * 2 + K * N * 2 + N * 4 + M * N * 4,
        transcendentals=0,
    )

    # NOTE: K is kept whole-resident.  On v7x (64 MiB VMEM) this plan breaks at
    # roughly half the K*N it does on v5e/v6e; add a K grid axis ("arbitrary",
    # last) with an f32 VMEM accumulator once K*N*2 bytes approaches ~16 MiB.
    return pl.pallas_call(
        _linear_kernel,
        out_shape=jax.ShapeDtypeStruct((M, N), jnp.float32),
        grid=grid,
        in_specs=[
            pl.BlockSpec((TM, K), lambda i: (i, 0)),                # streamed X tile
            pl.BlockSpec((K, N), lambda i: (0, 0),
                         pipeline_mode=pl.Buffered(1)),             # invariant W^T
            pl.BlockSpec((1, N), lambda i: (0, 0),
                         pipeline_mode=pl.Buffered(1)),             # invariant bias
        ],
        out_specs=pl.BlockSpec((TM, N), lambda i: (i, 0)),
        cost_estimate=cost,
        **kwargs,
    )(x_bf, w_t, b_row)


# ---------------------------------------------------------------------------
# In-kernel uniform [0, 1) generator (torch.rand analog)
# ---------------------------------------------------------------------------
def _rand_uniform_kernel(seed_ref, o_ref):
    pltpu.prng_seed(seed_ref[0])
    raw = pltpu.prng_random_bits(o_ref.shape)
    bits = pltpu.bitcast(raw, jnp.uint32)
    # Exponent trick: top 23 random bits as mantissa of a float in [1, 2), minus 1.
    fbits = (bits >> jnp.uint32(9)) | jnp.uint32(0x3F800000)
    o_ref[...] = pltpu.bitcast(fbits, jnp.float32) - 1.0


def rand_uniform_pallas(shape, seed):
    b, s, s2 = shape
    seed_arr = jnp.array([seed], dtype=jnp.int32)
    flat = pl.pallas_call(
        _rand_uniform_kernel,
        out_shape=jax.ShapeDtypeStruct((b * s, s2), jnp.float32),
        in_specs=[pl.BlockSpec(memory_space=pltpu.MemorySpace.SMEM)],
        out_specs=pl.BlockSpec(memory_space=pltpu.MemorySpace.VMEM),
    )(seed_arr)
    return flat.reshape(shape)


# ---------------------------------------------------------------------------
# DummyLayer forward
# ---------------------------------------------------------------------------
def dummy_layer_forward(X, w_t, b_row, out_dim, return_att=False, seed=0):
    batch, seq, in_dim = X.shape
    x_flat = X.reshape(batch * seq, in_dim)
    y = linear_pallas(x_flat, w_t, b_row)
    if y.shape[1] != out_dim:
        # Only when out_dim is not lane-aligned; single slice at the graph's end.
        y = y[:, :out_dim]
    Y = y.reshape(batch, seq, out_dim)

    if return_att:
        shape = (batch, seq, seq)
        if jax.default_backend() == "tpu":
            att = rand_uniform_pallas(shape, seed)
        else:
            # TODO(synk): pltpu PRNG primitives have no CPU/interpret lowering.
            att = jax.random.uniform(jax.random.PRNGKey(seed), shape, jnp.float32)
        return Y, att
    return Y


# ---------------------------------------------------------------------------
# Reference (inputs quantized to bf16, f32 accumulation — matches kernel precision)
# ---------------------------------------------------------------------------
def _ref_linear(X, weight, bias):
    xb = X.astype(jnp.bfloat16).astype(jnp.float32)
    wb = weight.astype(jnp.bfloat16).astype(jnp.float32)
    return jnp.einsum("bsk,nk->bsn", xb, wb) + bias


# ---------------------------------------------------------------------------
# Main
# ---------------------------------------------------------------------------
if __name__ == "__main__":
    key = jax.random.PRNGKey(0)

    # --- small shapes matching the module spec (out_dim=32 -> padded/sliced path)
    batch, seq, in_dim, out_dim = 2, 8, 32, 32
    kx, kw, kb, k2 = jax.random.split(key, 4)

    X = jax.random.normal(kx, (batch, seq, in_dim), dtype=jnp.float32)
    weight = jax.random.normal(kw, (out_dim, in_dim), dtype=jnp.float32) * (1.0 / in_dim ** 0.5)
    bias = jax.random.normal(kb, (out_dim,), dtype=jnp.float32) * 0.01

    w_t, b_row, n_out = prepare_params(weight, bias)

    Y = jax.block_until_ready(dummy_layer_forward(X, w_t, b_row, n_out, return_att=False))
    Y2, att = dummy_layer_forward(X, w_t, b_row, n_out, return_att=True, seed=0)
    jax.block_until_ready((Y2, att))

    Y_ref = _ref_linear(X, weight, bias)
    assert Y.shape == (batch, seq, out_dim)
    assert jnp.allclose(Y, Y_ref, atol=1e-2, rtol=1e-2), "mismatch vs reference (small)"
    assert jnp.allclose(Y2, Y_ref, atol=1e-2, rtol=1e-2), "mismatch vs reference (att path)"
    assert att.shape == (batch, seq, seq)
    assert bool(jnp.all((att >= 0.0) & (att < 1.0)))

    # --- larger, lane-aligned shapes: no pad/slice epilogue, multi-block tiled path
    b2, s2, k2d, n2d = 4, 256, 256, 256          # M = 1024 -> 2 grid steps of TM=512
    kx2, kw2, kb2 = jax.random.split(k2, 3)
    X2 = jax.random.normal(kx2, (b2, s2, k2d), dtype=jnp.float32)
    W2 = jax.random.normal(kw2, (n2d, k2d), dtype=jnp.float32) * (1.0 / k2d ** 0.5)
    B2 = jax.random.normal(kb2, (n2d,), dtype=jnp.float32) * 0.01

    w2_t, b2_row, n2_out = prepare_params(W2, B2)
    Y_big = jax.block_until_ready(dummy_layer_forward(X2, w2_t, b2_row, n2_out))
    Y_big_ref = _ref_linear(X2, W2, B2)
    assert Y_big.shape == (b2, s2, n2d)
    assert jnp.allclose(Y_big, Y_big_ref, atol=1e-2, rtol=1e-2), "mismatch vs reference (tiled)"

    print("KERNEL_OK")
</pallas_src>

<mosaic_0001>
module attributes {stable_mosaic.version = 11 : i64} {
  func.func @_linear_kernel(%arg0: i32, %arg1: memref<8x32xbf16, #tpu.memory_space<vmem>>, %arg2: memref<32x128xbf16, #tpu.memory_space<vmem>>, %arg3: memref<1x128xf32, #tpu.memory_space<vmem>>, %arg4: memref<8x128xf32, #tpu.memory_space<vmem>>) attributes {dimension_semantics = [#tpu.dimension_semantics<arbitrary>], iteration_bounds = array<i64: 2>, scalar_prefetch = 0 : i64, scratch_operands = 0 : i64, tpu.core_type = #tpu.core_type<tc>, window_params = [{transform_indices = @transform_0, window_bounds = array<i64: 8, 32>}, {pipeline_mode = #tpu.pipeline_mode<synchronous>, transform_indices = @transform_1, window_bounds = array<i64: 32, 128>}, {pipeline_mode = #tpu.pipeline_mode<synchronous>, transform_indices = @transform_2, window_bounds = array<i64: 1, 128>}, {transform_indices = @transform_3, window_bounds = array<i64: 8, 128>}]} {
    %c0 = arith.constant 0 : index
    %c0_0 = arith.constant 0 : index
    %0 = vector.load %arg1[%c0, %c0_0] : memref<8x32xbf16, #tpu.memory_space<vmem>>, vector<8x32xbf16>
    %c0_1 = arith.constant 0 : index
    %c0_2 = arith.constant 0 : index
    %1 = vector.load %arg2[%c0_1, %c0_2] : memref<32x128xbf16, #tpu.memory_space<vmem>>, vector<32x128xbf16>
    %cst = arith.constant dense<0.000000e+00> : vector<8x128xf32>
    %2 = tpu.matmul %0, %1, %cst {dimension_numbers = #tpu.dot_dimension_numbers<[1], [0], [0], [1], [0, 0, 1, 1], [], []>} : vector<8x32xbf16>, vector<32x128xbf16>, vector<8x128xf32> -> vector<8x128xf32>
    %c0_3 = arith.constant 0 : index
    %c0_4 = arith.constant 0 : index
    %3 = vector.load %arg3[%c0_3, %c0_4] : memref<1x128xf32, #tpu.memory_space<vmem>>, vector<1x128xf32>
    %4 = vector.broadcast %3 : vector<1x128xf32> to vector<8x128xf32>
    %5 = arith.addf %2, %4 : vector<8x128xf32>
    %c0_5 = arith.constant 0 : index
    %c0_6 = arith.constant 0 : index
    %6 = vector.load %arg4[%c0_5, %c0_6] : memref<8x128xf32, #tpu.memory_space<vmem>>, vector<8x128xf32>
    tpu.vector_store %arg4[%c0_5, %c0_6], %5 {strides = array<i32>} : memref<8x128xf32, #tpu.memory_space<vmem>>, vector<8x128xf32>,
    return
  }
  func.func @transform_0(%arg0: i32) -> (i32, i32) {
    %c0_i32 = arith.constant 0 : i32
    %c0_i32_0 = arith.constant 0 : i32
    return %arg0, %c0_i32 : i32, i32
  }
  func.func @transform_1(%arg0: i32) -> (i32, i32) {
    %c0_i32 = arith.constant 0 : i32
    %c0_i32_0 = arith.constant 0 : i32
    %c0_i32_1 = arith.constant 0 : i32
    return %c0_i32, %c0_i32_0 : i32, i32
  }
  func.func @transform_2(%arg0: i32) -> (i32, i32) {
    %c0_i32 = arith.constant 0 : i32
    %c0_i32_0 = arith.constant 0 : i32
    %c0_i32_1 = arith.constant 0 : i32
    return %c0_i32, %c0_i32_0 : i32, i32
  }
  func.func @transform_3(%arg0: i32) -> (i32, i32) {
    %c0_i32 = arith.constant 0 : i32
    %c0_i32_0 = arith.constant 0 : i32
    return %arg0, %c0_i32 : i32, i32
  }
}

</mosaic_0001>

<llo_original>
// kernel: tpu_custom_call.1
$region0: #{tpu_custom_call.1}
  #allocation0 [shape = 'u32[]', space=smem, size = 0x4, offset = 0x4, fixed_abs, tag = 'smem constant byte address 0x4 - core index']
  #allocation1 [shape = 'u32[72,128]{1,0:T(1,128)}', space=vmem, size = 0x9000, scoped, tag = 'internal scratch']
  %s0 = inlined_call_operand.hbm [shape: bf16[16,32], index: 0, kind: input, shape index: {}]
  %s1 = inlined_call_operand.hbm [shape: bf16[32,128], index: 1, kind: input, shape index: {}]
  %s2 = inlined_call_operand.vmem [shape: f32[1,128], index: 2, kind: input, shape index: {}]
  %s3 = inlined_call_operand.hbm [shape: f32[16,128], index: 3, kind: output, shape index: {}]
  %s4 = sld [smem:[#allocation0]]
  $region53: #{tpu_custom_call.1} parent=0
    _
  %s6 = ssub.s32 1, %s4
  %s7 = scalar_select 0, %s6, %s4
  $region1: #{tpu_custom_call.1} parent=0
    #allocation2 [shape = 'u8[4096]{0}', space=vmem, size = 0x1000, scoped, tag = 'input window, operand 0']
    #allocation3 [shape = 's32[2]{0}', space=sflag, size = 0x8, scoped, tag = 'scoped memory for tpu_custom_call.1']
    #allocation4 [shape = 's32[2]{0}', space=sflag, size = 0x8, scoped, tag = 'scoped memory for tpu_custom_call.1']
    #allocation5 [shape = 'u8[8192]{0}', space=vmem, size = 0x2000, scoped, tag = 'input window, operand 1, single buffered']
    #allocation6 [shape = 's32[1]{0}', space=sflag, size = 0x4, scoped, tag = 'scoped memory for tpu_custom_call.1']
    #allocation7 [shape = 'u8[8192]{0}', space=vmem, size = 0x2000, scoped, tag = 'output window, operand 0']
    %8 = vsyncpa [#allocation3], 0
    %s9 = scalar_lea.sflag [#allocation3], 1
    %10 = vsyncpa %s9, 0
    %11 = vsyncpa [#allocation6], 0
    %12 = vsyncpa [#allocation4], 0
    %s13 = scalar_lea.sflag [#allocation4], 1
    %14 = vsyncpa %s13, 0
    loop: start=0, step=1, limit=4
    $region2: #{tpu_custom_call.1} parent=1 // loop_pre_header
      _
    $region3: #{tpu_custom_call.1} parent=1 // loop_header
      %s16 = sphi 0, %s20
      %p17 = scmp.ge.s32.totalorder %s16, 4
      %s26 = sphi 0, %s28
      %s29 = sphi 0, %s26
      %s30 = sphi 0, %s29
      %s46 = sphi 0, %s30
      %s50 = sphi 0, %s50
      %s52 = sphi 0, %s50
      %s53 = sphi 0, %s52
      %s67 = sphi 0, %s53
      %s71 = sphi 0, %s71
      %s73 = sphi 0, %s71
      %s74 = sphi 0, %s73
      %s88 = sphi 0, %s74
      %s94 = sphi 0, %s96
      %s97 = sphi 0, %s94
      %s98 = sphi 0, %s97
      %s114 = sphi 0, %s98
    $region4: #{tpu_custom_call.1} parent=1 // loop_header_branch
      %19 = sbr.rel (%p17) target = $region8
    $region5: #{tpu_custom_call.1} parent=1 // loop_body
      %s21 = ssub.s32 %s16, 1
      %s22 = ssub.s32 %s16, 2
      %s23 = sadd.s32 %s16, 1
      %s24 = ssub.s32 %s16, %s23
      %p25 = scmp.eq.s32.totalorder %s24, 0
      %s27 = sadd.s32 %s26, 1
      %s28 = scalar_select %p25, %s26, %s27
      %p31 = pneg %p25
      %p32 = scmp.eq.s32.totalorder %s16, 1
      %p33 = por %p31, %p32
      %p34 = scmp.ne.s32.totalorder %s26, %s29
      %p35 = scmp.eq.s32.totalorder %s16, 0
      %p36 = por %p34, %p35
      %p37 = scmp.ne.s32.totalorder %s26, %s29
      %p38 = scmp.eq.s32.totalorder %s21, 1
      %p39 = por %p37, %p38
      %p40 = scmp.ne.s32.totalorder %s29, %s30
      %p41 = scmp.eq.s32.totalorder %s21, 0
      %p42 = por %p40, %p41
      %p43 = scmp.ne.s32.totalorder %s29, %s30
      %p44 = scmp.eq.s32.totalorder %s22, 1
      %p45 = por %p43, %p44
      %p47 = scmp.ne.s32.totalorder %s30, %s46
      %p48 = scmp.eq.s32.totalorder %s22, 0
      %p49 = por %p47, %p48
      %s51 = sadd.s32 %s50, 1
      %p54 = scmp.eq.s32.totalorder %s16, 1
      %p55 = scmp.ne.s32.totalorder %s50, %s52
      %p56 = scmp.eq.s32.totalorder %s16, 0
      %p57 = por %p55, %p56
      %p58 = scmp.ne.s32.totalorder %s50, %s52
      %p59 = scmp.eq.s32.totalorder %s21, 1
      %p60 = por %p58, %p59
      %p61 = scmp.ne.s32.totalorder %s52, %s53
      %p62 = scmp.eq.s32.totalorder %s21, 0
      %p63 = por %p61, %p62
      %p64 = scmp.ne.s32.totalorder %s52, %s53
      %p65 = scmp.eq.s32.totalorder %s22, 1
      %p66 = por %p64, %p65
      %p68 = scmp.ne.s32.totalorder %s53, %s67
      %p69 = scmp.eq.s32.totalorder %s22, 0
      %p70 = por %p68, %p69
      %s72 = sadd.s32 %s71, 1
      %p75 = scmp.eq.s32.totalorder %s16, 1
      %p76 = scmp.ne.s32.totalorder %s71, %s73
      %p77 = scmp.eq.s32.totalorder %s16, 0
      %p78 = por %p76, %p77
      %p79 = scmp.ne.s32.totalorder %s71, %s73
      %p80 = scmp.eq.s32.totalorder %s21, 1
      %p81 = por %p79, %p80
      %p82 = scmp.ne.s32.totalorder %s73, %s74
      %p83 = scmp.eq.s32.totalorder %s21, 0
      %p84 = por %p82, %p83
      %p85 = scmp.ne.s32.totalorder %s73, %s74
      %p86 = scmp.eq.s32.totalorder %s22, 1
      %p87 = por %p85, %p86
      %p89 = scmp.ne.s32.totalorder %s74, %s88
      %p90 = scmp.eq.s32.totalorder %s22, 0
      %p91 = por %p89, %p90
      %s92 = ssub.s32 %s16, %s23
      %p93 = scmp.eq.s32.totalorder %s92, 0
      %s95 = sadd.s32 %s94, 1
      %s96 = scalar_select %p93, %s94, %s95
      %p99 = pneg %p93
      %p100 = scmp.eq.s32.totalorder %s16, 1
      %p101 = por %p99, %p100
      %p102 = scmp.ne.s32.totalorder %s94, %s97
      %p103 = scmp.eq.s32.totalorder %s16, 0
      %p104 = por %p102, %p103
      %p105 = scmp.ne.s32.totalorder %s94, %s97
      %p106 = scmp.eq.s32.totalorder %s21, 1
      %p107 = por %p105, %p106
      %p108 = scmp.ne.s32.totalorder %s97, %s98
      %p109 = scmp.eq.s32.totalorder %s21, 0
      %p110 = por %p108, %p109
      %p111 = scmp.ne.s32.totalorder %s97, %s98
      %p112 = scmp.eq.s32.totalorder %s22, 1
      %p113 = por %p111, %p112
      %p115 = scmp.ne.s32.totalorder %s98, %s114
      %p116 = scmp.eq.s32.totalorder %s22, 0
      %p117 = por %p115, %p116
      %p118 = scmp.le.s32.totalorder 1, %s16
      %p119 = scmp.lt.s32.totalorder %s16, 3
      %p120 = pnand %p118, %p119
      %p121 = pneg %p120
      // Predicated region
      $region9: #{tpu_custom_call.1} parent=5 // pred_check
        _
      $region10: #{tpu_custom_call.1} parent=5 // pred_check_branch
        %123 = sbr.rel (%p120) target = $region12
      $region11: #{tpu_custom_call.1} parent=5 // pred_region
        %s124 = ssub.s32 %s16, 1
        // Predicated region
        $region13: #{tpu_custom_call.1} parent=11 // pred_check
          %p125 = pneg %p63
        $region14: #{tpu_custom_call.1} parent=11 // pred_check_branch
          %127 = sbr.rel (%p125) target = $region16
        $region15: #{tpu_custom_call.1} parent=11 // pred_region
          %129 = vsyncadd [#allocation6], 0
          %s130 = sshll.u32 %s1, 4
          %s131 = int_to_ptr.hbm [resolvable:$true] %s130
          %s132 = sshll.u32 [#allocation5], 4
          %s133 = int_to_ptr.vmem [resolvable:$true] %s132
          %138 = dma.hbm_to_vmem [thread:$0]  %s131, 256, %s133, [#allocation6], 64, 64, 4
        $region16: #{tpu_custom_call.1} parent=11 // pred_fallthru
          _
        // Predicated region
        $region17: #{tpu_custom_call.1} parent=11 // pred_check
          %p139 = pneg %p84
        $region18: #{tpu_custom_call.1} parent=11 // pred_check_branch
          %141 = sbr.rel (%p139) target = $region20
        $region19: #{tpu_custom_call.1} parent=11 // pred_region
          _
        $region20: #{tpu_custom_call.1} parent=11 // pred_fallthru
          _
      $region12: #{tpu_custom_call.1} parent=5 // pred_fallthru
        _
      %p142 = scmp.lt.s32.totalorder %s16, 2
      // Predicated region
      $region21: #{tpu_custom_call.1} parent=5 // pred_check
        %p143 = pneg %p142
      $region22: #{tpu_custom_call.1} parent=5 // pred_check_branch
        %145 = sbr.rel (%p143) target = $region24
      $region23: #{tpu_custom_call.1} parent=5 // pred_region
        // Predicated region
        $region25: #{tpu_custom_call.1} parent=23 // pred_check
          %p146 = pneg %p36
        $region26: #{tpu_custom_call.1} parent=23 // pred_check_branch
          %148 = sbr.rel (%p146) target = $region28
        $region27: #{tpu_custom_call.1} parent=23 // pred_region
          %s149 = sand.u32 %s26, 1
          %s150 = scalar_lea.sflag [#allocation3], %s149
          %s151 = sand.u32 %s26, 1
          %s152 = smul.addr %s151, 4
          %s153 = scalar_lea.vmem [#allocation2], %s152
          %155 = vsyncadd %s150, 0
          %s156 = smul.addr %s16, 4
          %s157 = scalar_lea.hbm %s0, %s156
          %s159 = sshll.u32 %s157, 4
          %s160 = int_to_ptr.hbm [resolvable:$true] %s159
          %s161 = sshll.u32 %s153, 4
          %s162 = int_to_ptr.vmem [resolvable:$true] %s161
          %164 = dma.hbm_to_vmem [thread:$0]  %s160, 64, %s162, %s150
        $region28: #{tpu_custom_call.1} parent=23 // pred_fallthru
          _
      $region24: #{tpu_custom_call.1} parent=5 // pred_fallthru
        _
      %p165 = scmp.le.s32.totalorder 1, %s16
      %p166 = scmp.lt.s32.totalorder %s16, 3
      %p167 = pnand %p165, %p166
      %p168 = pneg %p167
      // Predicated region
      $region29: #{tpu_custom_call.1} parent=5 // pred_check
        _
      $region30: #{tpu_custom_call.1} parent=5 // pred_check_branch
        %170 = sbr.rel (%p167) target = $region32
      $region31: #{tpu_custom_call.1} parent=5 // pred_region
        %s171 = ssub.s32 %s16, 1
        %s172 = sand.u32 %s29, 1
        %s173 = scalar_lea.sflag [#allocation3], %s172
        %s174 = sand.u32 %s29, 1
        %s175 = smul.addr %s174, 4
        %s176 = scalar_lea.vmem [#allocation2], %s175
        // Predicated region
        $region33: #{tpu_custom_call.1} parent=31 // pred_check
          %p177 = pneg %p42
        $region34: #{tpu_custom_call.1} parent=31 // pred_check_branch
          %179 = sbr.rel (%p177) target = $region36
        $region35: #{tpu_custom_call.1} parent=31 // pred_region
          %181 = dma.done %s173, 64
        $region36: #{tpu_custom_call.1} parent=31 // pred_fallthru
          _
        // Predicated region
        $region37: #{tpu_custom_call.1} parent=31 // pred_check
          %p182 = pneg %p63
        $region38: #{tpu_custom_call.1} parent=31 // pred_check_branch
          %184 = sbr.rel (%p182) target = $region40
        $region39: #{tpu_custom_call.1} parent=31 // pred_region
          %186 = dma.done [#allocation6], 256
        $region40: #{tpu_custom_call.1} parent=31 // pred_fallthru
          _
        %s187 = sand.u32 %s29, 1
        %s188 = scalar_lea.sflag [#allocation3], %s187
        %s189 = sand.u32 %s29, 1
        %s190 = smul.addr %s189, 4
        %s191 = scalar_lea.vmem [#allocation2], %s190
        %p192 = pneg %p42
        %p193 = pneg %p39
        %p194 = pneg %p63
        %p195 = pneg %p60
        %p196 = pneg %p84
        %p197 = pneg %p81
        %p198 = pneg %p110
        %p199 = pneg %p107
        %s200 = sand.u32 %s97, 1
        %s201 = scalar_lea.sflag [#allocation4], %s200
        %s202 = sand.u32 %s97, 1
        %s203 = smul.addr %s202, 8
        %s204 = scalar_lea.vmem [#allocation7], %s203
        %v206 = vld [vmem:[%s176] sm:$0xf]
        %v207 = vld [vmem:[#allocation5] sm:$0xf]
        %v208 = vld [vmem:[#allocation5 + $0x4] sm:$0xf]
        %v209 = vld [vmem:[#allocation5 + $0x8] sm:$0xf]
        %v210 = vld [vmem:[#allocation5 + $0xc] sm:$0xf]
        %v211 = vld [vmem:[%s2] sm:$0x1]
        %v213 = vperm.slane %v211, 0
        %v219 = vunpack.c.l.b16 %v207
        %v220 = vunpack.c.l.b16 %v208
        %v221 = vunpack.c.l.b16 %v209
        %v222 = vunpack.c.l.b16 %v210
        %v223 = vpack.c.b16 %v220, %v219
        %v224 = vpack.c.b16 %v222, %v221
        %vm227 = vcmask 261120
        %v229 = vsel %vm227, %v206, 0
        %231 = vmatpush.bf16.msra.mxu0 0
        %232 = vmatpush.bf16.msra.mxu0 0
        %233 = vmatpush.bf16.msra.mxu0 0
        %234 = vmatpush.bf16.msra.mxu0 0
        %235 = vmatpush.bf16.msra.mxu0 0
        %236 = vmatpush.bf16.msra.mxu0 0
        %237 = vmatpush.bf16.msra.mxu0 %v224
        %238 = vmatpush.bf16.msra.mxu0 %v223
        %239 = vmatmul.bf16.gmra.mxu0 %v229
        %v240 = vpop.f32.mrf.mxu0
        %v241 = vadd.f32 %v213, %v240
        %v242 = vpop.f32.mrf.mxu0
        %243 = vdwg.mxu0
        %244 = vst [vmem:[%s204] sm:$0xff] %v241
        %s245 = sand.u32 %s97, 1
        %s246 = scalar_lea.sflag [#allocation4], %s245
        %s247 = sand.u32 %s97, 1
        %s248 = smul.addr %s247, 8
        %s249 = scalar_lea.vmem [#allocation7], %s248
        // Predicated region
        $region41: #{tpu_custom_call.1} parent=31 // pred_check
          %p250 = pneg %p107
        $region42: #{tpu_custom_call.1} parent=31 // pred_check_branch
          %252 = sbr.rel (%p250) target = $region44
        $region43: #{tpu_custom_call.1} parent=31 // pred_region
          %254 = vsyncadd %s246, 0
          %s255 = smul.addr %s21, 8
          %s256 = scalar_lea.hbm %s3, %s255
          %s258 = sshll.u32 %s249, 4
          %s259 = int_to_ptr.vmem [resolvable:$true] %s258
          %s260 = sshll.u32 %s256, 4
          %s261 = int_to_ptr.hbm [resolvable:$true] %s260
          %263 = dma.vmem_to_hbm [thread:$0]  %s259, 128, %s261, %s246
        $region44: #{tpu_custom_call.1} parent=31 // pred_fallthru
          _
      $region32: #{tpu_custom_call.1} parent=5 // pred_fallthru
        _
      %p264 = scmp.le.s32.totalorder 2, %s16
      // Predicated region
      $region45: #{tpu_custom_call.1} parent=5 // pred_check
        %p265 = pneg %p264
      $region46: #{tpu_custom_call.1} parent=5 // pred_check_branch
        %267 = sbr.rel (%p265) target = $region48
      $region47: #{tpu_custom_call.1} parent=5 // pred_region
        %s268 = ssub.s32 %s16, 2
        // Predicated region
        $region49: #{tpu_custom_call.1} parent=47 // pred_check
          %p269 = pneg %p113
        $region50: #{tpu_custom_call.1} parent=47 // pred_check_branch
          %271 = sbr.rel (%p269) target = $region52
        $region51: #{tpu_custom_call.1} parent=47 // pred_region
          %s272 = sand.u32 %s98, 1
          %s273 = scalar_lea.sflag [#allocation4], %s272
          %s274 = sand.u32 %s98, 1
          %s275 = smul.addr %s274, 8
          %s276 = scalar_lea.vmem [#allocation7], %s275
          %278 = dma.done %s273, 128
        $region52: #{tpu_custom_call.1} parent=47 // pred_fallthru
          _
      $region48: #{tpu_custom_call.1} parent=5 // pred_fallthru
        _
    $region6: #{tpu_custom_call.1} parent=1 // loop_footer
      %s20 = sadd.s32 1, %s16
    $region7: #{tpu_custom_call.1} parent=1 // loop_footer_branch
      %15 = sbr.rel target = $region3
    $region8: #{tpu_custom_call.1} parent=1 // loop_exit
      _
    %279 = vsyncpa [#allocation3], 1
    %s280 = scalar_lea.sflag [#allocation3], 1
    %281 = vsyncpa %s280, 1
    %282 = vsyncpa [#allocation6], 1
    %283 = vsyncpa [#allocation4], 1
    %s284 = scalar_lea.sflag [#allocation4], 1
    %285 = vsyncpa %s284, 1

</llo_original>
